<compile_context>
chip_gen: v6e
topology: v6e:2x2x1
jax: 0.10.0
libtpu: 0.0.40
codegen_flags: <defaults>
</compile_context>

<pallas_src>
import functools

import jax
import jax.numpy as jnp
from jax.experimental import pallas as pl
from jax.experimental.pallas import tpu as pltpu


def _cdiv(a, b):
    return (a + b - 1) // b


def _round_up(x, m):
    return _cdiv(x, m) * m


def toy_model_kernel(xt_ref, w1_ref, b1_ref, w2_ref, b2_ref, o_ref):
    # xt_ref: (d_in, TILE_B)  activation tile, batch on lanes (lane-dense).
    # w1_ref: (d_h, d_in) f32, b1_ref: (d_h, 1) f32   -- resident in VMEM.
    # w2_ref: (d_out, d_h) f32, b2_ref: (d_out, 1) f32 -- resident in VMEM.
    # o_ref : (d_out, TILE_B)
    xt = xt_ref[...].astype(jnp.float32)          # cheap VPU cast if x is bf16
    h = jnp.dot(w1_ref[...], xt, preferred_element_type=jnp.float32)
    h = jnp.maximum(h + b1_ref[...], 0.0)         # bias + ReLU, all f32 on VPU
    y = jnp.dot(w2_ref[...], h, preferred_element_type=jnp.float32) + b2_ref[...]
    o_ref[...] = y.astype(o_ref.dtype)


@functools.partial(jax.jit, static_argnames=("tile_b_max",))
def toy_model_forward_t(xt, w1, b1, w2, b2, *, tile_b_max=32768):
    """Fast path: xt is (10, B) (features, batch); returns (5, B).

    No layout passes: the only HBM traffic is the kernel's own streams."""
    d_in, B = xt.shape
    d_hidden = w1.shape[0]
    d_out = w2.shape[0]
    out_dtype = xt.dtype

    # Weights/biases stay f32: <1 KiB total, resident in VMEM; narrowing them
    # would buy no bandwidth and only cost accuracy.
    w1 = w1.astype(jnp.float32)
    b1 = b1.reshape(d_hidden, 1).astype(jnp.float32)
    w2 = w2.astype(jnp.float32)
    b2 = b2.reshape(d_out, 1).astype(jnp.float32)

    # Batch tiling: pick the step count first, then a 128-aligned tile, so tail
    # padding is bounded by <128 rows per step.  Keep the grid even (>=2) when
    # the batch allows so v7x's two TensorCores both get tiles.
    b128 = _round_up(B, 128)
    n_steps = max(_cdiv(b128, tile_b_max), 1)
    if b128 >= 256:
        n_steps = max(n_steps, 2)
        n_steps += n_steps % 2
    tile_b = _round_up(_cdiv(b128, n_steps), 128)
    b_pad = n_steps * tile_b

    if b_pad != B:
        xt = jnp.pad(xt, ((0, 0), (0, b_pad - B)))

    in_bytes = jnp.dtype(xt.dtype).itemsize
    out_bytes = jnp.dtype(out_dtype).itemsize
    cost = pl.CostEstimate(
        flops=2 * b_pad * (d_in * d_hidden + d_hidden * d_out),
        transcendentals=0,
        bytes_accessed=(
            in_bytes * d_in * b_pad
            + 4 * (d_hidden * d_in + d_hidden + d_out * d_hidden + d_out)
            + out_bytes * d_out * b_pad),
    )

    # Note: if an xprof trace on v5e (slowest HBM) still shows exposed DMA at
    # tile boundaries, add pipeline_mode=pl.Buffered(3) to the x BlockSpec.
    out_t = pl.pallas_call(
        toy_model_kernel,
        out_shape=jax.ShapeDtypeStruct((d_out, b_pad), out_dtype),
        grid=(n_steps,),
        in_specs=[
            pl.BlockSpec((d_in, tile_b), lambda i: (0, i)),      # x tile (pipelined)
            pl.BlockSpec((d_hidden, d_in), lambda i: (0, 0)),    # w1 (resident)
            pl.BlockSpec((d_hidden, 1), lambda i: (0, 0)),       # b1 (resident)
            pl.BlockSpec((d_out, d_hidden), lambda i: (0, 0)),   # w2 (resident)
            pl.BlockSpec((d_out, 1), lambda i: (0, 0)),          # b2 (resident)
        ],
        out_specs=pl.BlockSpec((d_out, tile_b), lambda i: (0, i)),
        compiler_params=pltpu.CompilerParams(
            dimension_semantics=("parallel",)),
        cost_estimate=cost,
    )(xt, w1, b1, w2, b2)

    if b_pad != B:
        out_t = out_t[:, :B]
    return out_t


@functools.partial(jax.jit, static_argnames=("tile_b_max",))
def toy_model_forward(x, w1, b1, w2, b2, *, tile_b_max=32768):
    """PyTorch-compatible layout: x is (B, 10), returns (B, 5).

    NOTE: the (B,10)<->(10,B) transposes here are separate XLA HBM passes
    (~3x total traffic for this bandwidth-bound op).  Prefer
    toy_model_forward_t when the surrounding pipeline can produce/consume the
    (features, batch) layout directly."""
    yt = toy_model_forward_t(x.T, w1, b1, w2, b2, tile_b_max=tile_b_max)
    return yt.T


def init_params(key):
    """Deterministic init mimicking nn.Linear's U(-1/sqrt(fan_in), 1/sqrt(fan_in)).

    Weights stored in PyTorch layout: (out_features, in_features)."""
    k1, k2, k3, k4 = jax.random.split(key, 4)
    bound = 1.0 / jnp.sqrt(10.0)
    w1 = jax.random.uniform(k1, (10, 10), jnp.float32, -bound, bound)
    b1 = jax.random.uniform(k2, (10,), jnp.float32, -bound, bound)
    w2 = jax.random.uniform(k3, (5, 10), jnp.float32, -bound, bound)
    b2 = jax.random.uniform(k4, (5,), jnp.float32, -bound, bound)
    return w1, b1, w2, b2


if __name__ == "__main__":
    key = jax.random.PRNGKey(0)
    kx, kp = jax.random.split(key)
    batch = 8
    x = jax.random.normal(kx, (batch, 10), jnp.float32)
    w1, b1, w2, b2 = init_params(kp)

    # pure-JAX reference (PyTorch nn.Linear semantics: y = x @ W^T + b)
    ref = jnp.maximum(x @ w1.T + b1, 0.0) @ w2.T + b2

    # 1) PyTorch-layout wrapper, exact f32 path.
    out = jax.block_until_ready(toy_model_forward(x, w1, b1, w2, b2))
    assert out.shape == (batch, 5)
    assert jnp.allclose(out, ref, atol=1e-5, rtol=1e-4)

    # 2) Transposed fast path (no wrapper layout passes).
    out_t = jax.block_until_ready(toy_model_forward_t(x.T, w1, b1, w2, b2))
    assert out_t.shape == (5, batch)
    assert jnp.allclose(out_t.T, ref, atol=1e-5, rtol=1e-4)

    # 3) bf16 activation-stream path (weights + in-kernel math stay f32;
    #    tolerance loosened only for the bf16 quantization of x / output).
    out_bf16 = jax.block_until_ready(
        toy_model_forward(x.astype(jnp.bfloat16), w1, b1, w2, b2))
    assert out_bf16.dtype == jnp.bfloat16
    assert jnp.allclose(out_bf16.astype(jnp.float32), ref, atol=3e-2, rtol=3e-2)

    print("KERNEL_OK")
</pallas_src>

<mosaic_0001>
module attributes {stable_mosaic.version = 11 : i64} {
  func.func @toy_model_kernel(%arg0: i32, %arg1: memref<10x128xf32, #tpu.memory_space<vmem>>, %arg2: memref<10x10xf32, #tpu.memory_space<vmem>>, %arg3: memref<10x1xf32, #tpu.memory_space<vmem>>, %arg4: memref<5x10xf32, #tpu.memory_space<vmem>>, %arg5: memref<5x1xf32, #tpu.memory_space<vmem>>, %arg6: memref<5x128xf32, #tpu.memory_space<vmem>>) attributes {dimension_semantics = [#tpu.dimension_semantics<parallel>], iteration_bounds = array<i64: 1>, scalar_prefetch = 0 : i64, scratch_operands = 0 : i64, tpu.core_type = #tpu.core_type<tc>, window_params = [{transform_indices = @transform_0, window_bounds = array<i64: 10, 128>}, {pipeline_mode = #tpu.pipeline_mode<synchronous>, transform_indices = @transform_1, window_bounds = array<i64: 10, 10>}, {pipeline_mode = #tpu.pipeline_mode<synchronous>, transform_indices = @transform_2, window_bounds = array<i64: 10, 1>}, {pipeline_mode = #tpu.pipeline_mode<synchronous>, transform_indices = @transform_3, window_bounds = array<i64: 5, 10>}, {pipeline_mode = #tpu.pipeline_mode<synchronous>, transform_indices = @transform_4, window_bounds = array<i64: 5, 1>}, {transform_indices = @transform_5, window_bounds = array<i64: 5, 128>}]} {
    %c0 = arith.constant 0 : index
    %c0_0 = arith.constant 0 : index
    %0 = vector.load %arg1[%c0, %c0_0] : memref<10x128xf32, #tpu.memory_space<vmem>>, vector<10x128xf32>
    %c0_1 = arith.constant 0 : index
    %c0_2 = arith.constant 0 : index
    %1 = vector.load %arg2[%c0_1, %c0_2] : memref<10x10xf32, #tpu.memory_space<vmem>>, vector<10x10xf32>
    %cst = arith.constant dense<0.000000e+00> : vector<10x128xf32>
    %2 = tpu.matmul %1, %0, %cst {dimension_numbers = #tpu.dot_dimension_numbers<[1], [0], [0], [1], [0, 0, 1, 1], [], []>} : vector<10x10xf32>, vector<10x128xf32>, vector<10x128xf32> -> vector<10x128xf32>
    %c0_3 = arith.constant 0 : index
    %c0_4 = arith.constant 0 : index
    %3 = vector.load %arg3[%c0_3, %c0_4] : memref<10x1xf32, #tpu.memory_space<vmem>>, vector<10x1xf32>
    %4 = vector.broadcast %3 : vector<10x1xf32> to vector<10x128xf32>
    %5 = arith.addf %2, %4 : vector<10x128xf32>
    %cst_5 = arith.constant 0.000000e+00 : f32
    %6 = vector.broadcast %cst_5 : f32 to vector<10x128xf32>
    %7 = arith.maximumf %5, %6 : vector<10x128xf32>
    %c0_6 = arith.constant 0 : index
    %c0_7 = arith.constant 0 : index
    %8 = vector.load %arg4[%c0_6, %c0_7] : memref<5x10xf32, #tpu.memory_space<vmem>>, vector<5x10xf32>
    %cst_8 = arith.constant dense<0.000000e+00> : vector<5x128xf32>
    %9 = tpu.matmul %8, %7, %cst_8 {dimension_numbers = #tpu.dot_dimension_numbers<[1], [0], [0], [1], [0, 0, 1, 1], [], []>} : vector<5x10xf32>, vector<10x128xf32>, vector<5x128xf32> -> vector<5x128xf32>
    %c0_9 = arith.constant 0 : index
    %c0_10 = arith.constant 0 : index
    %10 = vector.load %arg5[%c0_9, %c0_10] : memref<5x1xf32, #tpu.memory_space<vmem>>, vector<5x1xf32>
    %11 = vector.broadcast %10 : vector<5x1xf32> to vector<5x128xf32>
    %12 = arith.addf %9, %11 : vector<5x128xf32>
    %c0_11 = arith.constant 0 : index
    %c0_12 = arith.constant 0 : index
    %13 = vector.load %arg6[%c0_11, %c0_12] : memref<5x128xf32, #tpu.memory_space<vmem>>, vector<5x128xf32>
    tpu.vector_store %arg6[%c0_11, %c0_12], %12 {strides = array<i32>} : memref<5x128xf32, #tpu.memory_space<vmem>>, vector<5x128xf32>,
    return
  }
  func.func @transform_0(%arg0: i32) -> (i32, i32) {
    %c0_i32 = arith.constant 0 : i32
    %c0_i32_0 = arith.constant 0 : i32
    return %c0_i32, %arg0 : i32, i32
  }
  func.func @transform_1(%arg0: i32) -> (i32, i32) {
    %c0_i32 = arith.constant 0 : i32
    %c0_i32_0 = arith.constant 0 : i32
    %c0_i32_1 = arith.constant 0 : i32
    return %c0_i32, %c0_i32_0 : i32, i32
  }
  func.func @transform_2(%arg0: i32) -> (i32, i32) {
    %c0_i32 = arith.constant 0 : i32
    %c0_i32_0 = arith.constant 0 : i32
    %c0_i32_1 = arith.constant 0 : i32
    return %c0_i32, %c0_i32_0 : i32, i32
  }
  func.func @transform_3(%arg0: i32) -> (i32, i32) {
    %c0_i32 = arith.constant 0 : i32
    %c0_i32_0 = arith.constant 0 : i32
    %c0_i32_1 = arith.constant 0 : i32
    return %c0_i32, %c0_i32_0 : i32, i32
  }
  func.func @transform_4(%arg0: i32) -> (i32, i32) {
    %c0_i32 = arith.constant 0 : i32
    %c0_i32_0 = arith.constant 0 : i32
    %c0_i32_1 = arith.constant 0 : i32
    return %c0_i32, %c0_i32_0 : i32, i32
  }
  func.func @transform_5(%arg0: i32) -> (i32, i32) {
    %c0_i32 = arith.constant 0 : i32
    %c0_i32_0 = arith.constant 0 : i32
    return %c0_i32, %arg0 : i32, i32
  }
}

</mosaic_0001>

<llo_original>
// kernel: toy_model_forward_t.1
$region0: #{toy_model_forward_t.1}
  #allocation0 [shape = 'u32[]', space=smem, size = 0x4, offset = 0x4, fixed_abs, tag = 'smem constant byte address 0x4 - core index']
  #allocation1 [shape = 'u32[144,128]{1,0:T(1,128)}', space=vmem, size = 0x12000, scoped, tag = 'internal scratch']
  %s0 = inlined_call_operand.vmem [shape: f32[10,128], index: 0, kind: input, shape index: {}]
  %s1 = inlined_call_operand.vmem [shape: f32[10,10], index: 1, kind: input, shape index: {}]
  %s2 = inlined_call_operand.vmem [shape: f32[10,1], index: 2, kind: input, shape index: {}]
  %s3 = inlined_call_operand.vmem [shape: f32[5,10], index: 3, kind: input, shape index: {}]
  %s4 = inlined_call_operand.vmem [shape: f32[5,1], index: 4, kind: input, shape index: {}]
  %s5 = inlined_call_operand.hbm [shape: f32[5,128], index: 5, kind: output, shape index: {}]
  %s6 = sld [smem:[#allocation0]]
  $region30: #{toy_model_forward_t.1} parent=0
    _
  %s8 = ssub.s32 1, %s6
  %s9 = scalar_select 0, %s8, %s6
  $region1: #{toy_model_forward_t.1} parent=0
    #allocation2 [shape = 'u8[4096]{0}', space=vmem, size = 0x1000, scoped, tag = 'output window, operand 0, single buffered']
    #allocation3 [shape = 's32[1]{0}', space=sflag, size = 0x4, scoped, tag = 'scoped memory for toy_model_forward_t.1']
    %10 = vsyncpa [#allocation3], 0
    // Predicated region
    $region2: #{toy_model_forward_t.1} parent=1 // pred_check
      _
    $region3: #{toy_model_forward_t.1} parent=1 // pred_check_branch
      %12 = sbr.rel (0) target = $region5
    $region4: #{toy_model_forward_t.1} parent=1 // pred_region
      _
    $region5: #{toy_model_forward_t.1} parent=1 // pred_fallthru
      _
    // Predicated region
    $region6: #{toy_model_forward_t.1} parent=1 // pred_check
      _
    $region7: #{toy_model_forward_t.1} parent=1 // pred_check_branch
      %14 = sbr.rel (0) target = $region9
    $region8: #{toy_model_forward_t.1} parent=1 // pred_region
      _
    $region9: #{toy_model_forward_t.1} parent=1 // pred_fallthru
      _
    // Predicated region
    $region10: #{toy_model_forward_t.1} parent=1 // pred_check
      _
    $region11: #{toy_model_forward_t.1} parent=1 // pred_check_branch
      %16 = sbr.rel (0) target = $region13
    $region12: #{toy_model_forward_t.1} parent=1 // pred_region
      _
    $region13: #{toy_model_forward_t.1} parent=1 // pred_fallthru
      _
    // Predicated region
    $region14: #{toy_model_forward_t.1} parent=1 // pred_check
      _
    $region15: #{toy_model_forward_t.1} parent=1 // pred_check_branch
      %18 = sbr.rel (0) target = $region17
    $region16: #{toy_model_forward_t.1} parent=1 // pred_region
      _
    $region17: #{toy_model_forward_t.1} parent=1 // pred_fallthru
      _
    // Predicated region
    $region18: #{toy_model_forward_t.1} parent=1 // pred_check
      _
    $region19: #{toy_model_forward_t.1} parent=1 // pred_check_branch
      %20 = sbr.rel (0) target = $region21
    $region20: #{toy_model_forward_t.1} parent=1 // pred_region
      _
    $region21: #{toy_model_forward_t.1} parent=1 // pred_fallthru
      _
    %v21 = vld [vmem:[%s0] sm:$0xff]
    %v22 = vld [vmem:[%s0 + $0x8] sm:$0x3]
    %v23 = vld [vmem:[%s1] sm:$0xff]
    %v24 = vld [vmem:[%s1 + $0x8] sm:$0x3]
    %v25 = vld [vmem:[%s2] sm:$0xff]
    %v26 = vld [vmem:[%s2 + $0x8] sm:$0x3]
    %28 = vset.pattern.permute.xlu0 0
    %29 = vperm.xlu0 %28, %v25
    %v30 = vpop.permute.xlu0 %29
    %33 = vset.pattern.permute.xlu0 0
    %34 = vperm.xlu0 %33, %v26
    %v35 = vpop.permute.xlu0 %34
    %vm37 = vcmask 80896
    %v39 = vsel %vm37, %v23, 0
    %v42 = vsel %vm37, %v24, 0
    %vm44 = vcmask 1041408
    %v46 = vsel %vm44, %v22, 0
    %48 = vmatprep.subr.mxu0 0.0
    %49 = vmatpush1.msra.mxu0 0.0
    %50 = vmatprep.subr.mxu0 0.0
    %51 = vmatpush1.msra.mxu0 0.0
    %52 = vmatprep.subr.mxu0 0.0
    %53 = vmatpush1.msra.mxu0 0.0
    %54 = vmatprep.subr.mxu0 0.0
    %55 = vmatpush1.msra.mxu0 0.0
    %56 = vmatprep.subr.mxu0 0.0
    %57 = vmatpush1.msra.mxu0 0.0
    %58 = vmatprep.subr.mxu0 0.0
    %59 = vmatpush1.msra.mxu0 0.0
    %60 = vmatprep.subr.mxu0 0.0
    %61 = vmatpush1.msra.mxu0 0.0
    %62 = vmatprep.subr.mxu0 0.0
    %63 = vmatpush1.msra.mxu0 0.0
    %64 = vmatprep.subr.mxu0 0.0
    %65 = vmatpush1.msra.mxu0 0.0
    %66 = vmatprep.subr.mxu0 0.0
    %67 = vmatpush1.msra.mxu0 0.0
    %68 = vmatprep.subr.mxu0 0.0
    %69 = vmatpush1.msra.mxu0 0.0
    %70 = vmatprep.subr.mxu0 0.0
    %71 = vmatpush1.msra.mxu0 0.0
    %72 = vmatprep.subr.mxu0 0.0
    %73 = vmatpush1.msra.mxu0 0.0
    %74 = vmatprep.subr.mxu0 0.0
    %75 = vmatpush1.msra.mxu0 0.0
    %76 = vmatprep.subr.mxu0 0.0
    %77 = vmatpush1.msra.mxu0 %v46
    %78 = vmatprep.subr.mxu0 0.0
    %79 = vmatpush1.msra.mxu0 %v21
    %80 = vmatprep.subr.mxu0 0.0
    %81 = vmatpush2.msra.mxu0 0.0
    %82 = vmatprep.subr.mxu0 0.0
    %83 = vmatpush2.msra.mxu0 0.0
    %84 = vmatprep.subr.mxu0 0.0
    %85 = vmatpush2.msra.mxu0 0.0
    %86 = vmatprep.subr.mxu0 0.0
    %87 = vmatpush2.msra.mxu0 0.0
    %88 = vmatprep.subr.mxu0 0.0
    %89 = vmatpush2.msra.mxu0 0.0
    %90 = vmatprep.subr.mxu0 0.0
    %91 = vmatpush2.msra.mxu0 0.0
    %92 = vmatprep.subr.mxu0 0.0
    %93 = vmatpush2.msra.mxu0 0.0
    %94 = vmatprep.subr.mxu0 0.0
    %95 = vmatpush2.msra.mxu0 0.0
    %96 = vmatprep.subr.mxu0 0.0
    %97 = vmatpush2.msra.mxu0 0.0
    %98 = vmatprep.subr.mxu0 0.0
    %99 = vmatpush2.msra.mxu0 0.0
    %100 = vmatprep.subr.mxu0 0.0
    %101 = vmatpush2.msra.mxu0 0.0
    %102 = vmatprep.subr.mxu0 0.0
    %103 = vmatpush2.msra.mxu0 0.0
    %104 = vmatprep.subr.mxu0 0.0
    %105 = vmatpush2.msra.mxu0 0.0
    %106 = vmatprep.subr.mxu0 0.0
    %107 = vmatpush2.msra.mxu0 0.0
    %108 = vmatprep.subr.mxu0 0.0
    %109 = vmatpush2.msra.mxu0 0.0
    %110 = vmatprep.subr.mxu0 0.0
    %111 = vmatpush2.msra.mxu0 0.0
    %112 = vmatprep.mubr.f32.mxu0 0.0
    %113 = vmatmul.mubr.f32.gmra.mxu0 %v39
    %v114 = vpop.f32.mrf.mxu0
    %v115 = vadd.f32 %v30, %v114
    %v116 = vpop.f32.mrf.mxu0
    %117 = vmatprep.mubr.f32.mxu0 0.0
    %118 = vmatmul.mubr.f32.gmra.mxu0 %v42
    %v119 = vpop.f32.mrf.mxu0
    %v120 = vadd.f32 %v35, %v119
    %v121 = vpop.f32.mrf.mxu0
    %122 = vdwg.mxu0
    %v123 = vmax.f32 %v115, 0.0
    %v124 = vmax.f32 %v120, 0.0
    %v125 = vld [vmem:[%s3] sm:$0x1f]
    %v126 = vld [vmem:[%s4] sm:$0x1f]
    %128 = vset.pattern.permute.xlu0 0
    %129 = vperm.xlu0 %128, %v126
    %v130 = vpop.permute.xlu0 %129
    %v133 = vsel %vm37, %v125, 0
    %v136 = vsel %vm44, %v124, 0
    %138 = vmatprep.subr.mxu0 0.0
    %139 = vmatpush1.msra.mxu0 0.0
    %140 = vmatprep.subr.mxu0 0.0
    %141 = vmatpush1.msra.mxu0 0.0
    %142 = vmatprep.subr.mxu0 0.0
    %143 = vmatpush1.msra.mxu0 0.0
    %144 = vmatprep.subr.mxu0 0.0
    %145 = vmatpush1.msra.mxu0 0.0
    %146 = vmatprep.subr.mxu0 0.0
    %147 = vmatpush1.msra.mxu0 0.0
    %148 = vmatprep.subr.mxu0 0.0
    %149 = vmatpush1.msra.mxu0 0.0
    %150 = vmatprep.subr.mxu0 0.0
    %151 = vmatpush1.msra.mxu0 0.0
    %152 = vmatprep.subr.mxu0 0.0
    %153 = vmatpush1.msra.mxu0 0.0
    %154 = vmatprep.subr.mxu0 0.0
    %155 = vmatpush1.msra.mxu0 0.0
    %156 = vmatprep.subr.mxu0 0.0
    %157 = vmatpush1.msra.mxu0 0.0
    %158 = vmatprep.subr.mxu0 0.0
    %159 = vmatpush1.msra.mxu0 0.0
    %160 = vmatprep.subr.mxu0 0.0
    %161 = vmatpush1.msra.mxu0 0.0
    %162 = vmatprep.subr.mxu0 0.0
    %163 = vmatpush1.msra.mxu0 0.0
    %164 = vmatprep.subr.mxu0 0.0
    %165 = vmatpush1.msra.mxu0 0.0
    %166 = vmatprep.subr.mxu0 0.0
    %167 = vmatpush1.msra.mxu0 %v136
    %168 = vmatprep.subr.mxu0 0.0
    %169 = vmatpush1.msra.mxu0 %v123
    %170 = vmatprep.subr.mxu0 0.0
    %171 = vmatpush2.msra.mxu0 0.0
    %172 = vmatprep.subr.mxu0 0.0
    %173 = vmatpush2.msra.mxu0 0.0
    %174 = vmatprep.subr.mxu0 0.0
    %175 = vmatpush2.msra.mxu0 0.0
    %176 = vmatprep.subr.mxu0 0.0
    %177 = vmatpush2.msra.mxu0 0.0
    %178 = vmatprep.subr.mxu0 0.0
    %179 = vmatpush2.msra.mxu0 0.0
    %180 = vmatprep.subr.mxu0 0.0
    %181 = vmatpush2.msra.mxu0 0.0
    %182 = vmatprep.subr.mxu0 0.0
    %183 = vmatpush2.msra.mxu0 0.0
    %184 = vmatprep.subr.mxu0 0.0
    %185 = vmatpush2.msra.mxu0 0.0
    %186 = vmatprep.subr.mxu0 0.0
    %187 = vmatpush2.msra.mxu0 0.0
    %188 = vmatprep.subr.mxu0 0.0
    %189 = vmatpush2.msra.mxu0 0.0
    %190 = vmatprep.subr.mxu0 0.0
    %191 = vmatpush2.msra.mxu0 0.0
    %192 = vmatprep.subr.mxu0 0.0
    %193 = vmatpush2.msra.mxu0 0.0
    %194 = vmatprep.subr.mxu0 0.0
    %195 = vmatpush2.msra.mxu0 0.0
    %196 = vmatprep.subr.mxu0 0.0
    %197 = vmatpush2.msra.mxu0 0.0
    %198 = vmatprep.subr.mxu0 0.0
    %199 = vmatpush2.msra.mxu0 0.0
    %200 = vmatprep.subr.mxu0 0.0
    %201 = vmatpush2.msra.mxu0 0.0
    %202 = vmatprep.mubr.f32.mxu0 0.0
    %203 = vmatmul.mubr.f32.gmra.mxu0 %v133
    %v204 = vpop.f32.mrf.mxu0
    %v205 = vadd.f32 %v130, %v204
    %v206 = vpop.f32.mrf.mxu0
    %207 = vdwg.mxu0
    %208 = vst [vmem:[#allocation2] sm:$0x1f] %v205
    // Predicated region
    $region22: #{toy_model_forward_t.1} parent=1 // pred_check
      _
    $region23: #{toy_model_forward_t.1} parent=1 // pred_check_branch
      %210 = sbr.rel (0) target = $region25
    $region24: #{toy_model_forward_t.1} parent=1 // pred_region
      %s212 = ssub.s32 128, 128
      %213 = vsyncadd [#allocation3], %s212
      %s215 = sshll.u32 [#allocation2], 4
      %s216 = int_to_ptr.vmem [resolvable:$true] %s215
      %218 = dma.vmem_to_hbm [thread:$0]  %s216, 128, %s5, [#allocation3]
    $region25: #{toy_model_forward_t.1} parent=1 // pred_fallthru
      _
    // Predicated region
    $region26: #{toy_model_forward_t.1} parent=1 // pred_check
      _
    $region27: #{toy_model_forward_t.1} parent=1 // pred_check_branch
      %220 = sbr.rel (0) target = $region29
    $region28: #{toy_model_forward_t.1} parent=1 // pred_region
      %221 = dma.done [#allocation3], 128
    $region29: #{toy_model_forward_t.1} parent=1 // pred_fallthru
      _
    %222 = vsyncpa [#allocation3], 1

</llo_original>
